<compile_context>
chip_gen: v6e
topology: v6e:2x2x1
jax: 0.10.0
libtpu: 0.0.40
codegen_flags: <defaults>
</compile_context>

<pallas_src>
import jax
import jax.numpy as jnp
from jax.experimental import pallas as pl
from jax.experimental.pallas import tpu as pltpu


def _round_up(n: int, m: int) -> int:
    return ((n + m - 1) // m) * m


# ---------------------------------------------------------------------------
# Kernel
# ---------------------------------------------------------------------------
def _linear_kernel(x_ref, w_ref, b_ref, o_ref):
    # x_ref: (TB, F)  w_ref: (F, Cp)  b_ref: (1, Cp) f32  o_ref: (TB, Cp)
    x = x_ref[...]
    if x.dtype != w_ref.dtype:
        # In-kernel VPU cast (e.g. f32 -> bf16 MXU feed); hidden under the DMA,
        # avoids a separate wrapper-side HBM read+write of x.
        x = x.astype(w_ref.dtype)
    acc = jnp.dot(x, w_ref[...], preferred_element_type=jnp.float32)
    o_ref[...] = (acc + b_ref[...]).astype(o_ref.dtype)


# ---------------------------------------------------------------------------
# Param preparation (one-time; do NOT call per forward)
# ---------------------------------------------------------------------------
def prepare_params(weight, bias, *, mxu_dtype=None):
    """weight: (n_classes, in_features) [PyTorch nn.Linear layout], bias: (n_classes,).

    Returns (w_t, b2, n_classes):
      w_t: (in_features, C_pad) pre-transposed, zero-padded to the *minimal*
           lane-dense multiple of 128, optionally cast to `mxu_dtype`
           (bf16 recommended on v5e/v6e/v7x; fp8 possible on v7x if the
           producer emits fp8 activations).
      b2:  (1, C_pad) float32 bias (epilogue stays f32).
    """
    n_classes, in_features = weight.shape
    c_pad = _round_up(max(n_classes, 128), 128)

    w_t = weight.T  # (F, C)
    if mxu_dtype is not None:
        w_t = w_t.astype(mxu_dtype)
    w_t = jnp.pad(w_t, ((0, 0), (0, c_pad - n_classes)))

    b2 = jnp.pad(bias.astype(jnp.float32), (0, c_pad - n_classes)).reshape(1, c_pad)
    return w_t, b2, n_classes


# ---------------------------------------------------------------------------
# Tiling / VMEM-budget heuristics
# ---------------------------------------------------------------------------
def _vmem_capacity_bytes() -> int:
    """Physical VMEM per core; fall back to the v7x lower bound (64 MiB)."""
    try:
        return int(pltpu.get_tpu_info().vmem_capacity_bytes)
    except Exception:
        return 64 * 1024 * 1024


def _choose_tb(B: int, tb_cap: int) -> int:
    """Pick a batch tile TB <= tb_cap.

    Preference order: no padding pass (TB divides B, or TB == B), as large as
    possible, multiple of 256 for full MXU passes, and grid >= 2 for large
    batches so v7x's two TensorCores both get work.
    """
    if B <= tb_cap:
        if B >= 512 and B % 2 == 0 and (B // 2) % 8 == 0:
            return B // 2          # grid == 2 -> both v7x TCs busy
        return B                   # single block == full dim: legal, no padding
    for tb in (2048, 1024, 512, 256, 128, 64, 32, 16, 8):
        if tb <= tb_cap and B % tb == 0:
            return tb
    return max(8, (tb_cap // 8) * 8)  # ragged tail: wrapper pads (fallback only)


# Flipped to False (and cached) if this jax/Mosaic build rejects Buffered(1).
_SINGLE_BUFFER_RESIDENT_OK = True


def _pallas_linear(x, w_t, b2, *, TB, Cp, out_dtype, vmem_limit, cost,
                   single_buffer_resident):
    Bp, F = x.shape
    resident_kw = dict(pipeline_mode=pl.Buffered(1)) if single_buffer_resident else {}
    in_specs = [
        pl.BlockSpec((TB, F), lambda i: (i, 0)),                  # streamed x tiles
        pl.BlockSpec((F, Cp), lambda i: (0, 0), **resident_kw),   # VMEM-resident weight
        pl.BlockSpec((1, Cp), lambda i: (0, 0), **resident_kw),   # VMEM-resident bias
    ]
    out_spec = pl.BlockSpec((TB, Cp), lambda i: (i, 0))
    return pl.pallas_call(
        _linear_kernel,
        out_shape=jax.ShapeDtypeStruct((Bp, Cp), out_dtype),
        grid_spec=pltpu.PrefetchScalarGridSpec(
            num_scalar_prefetch=0,
            grid=(Bp // TB,),
            in_specs=in_specs,
            out_specs=out_spec,
        ),
        compiler_params=pltpu.CompilerParams(
            dimension_semantics=("parallel",),   # batch tiles independent (v7x: 2 TCs)
            vmem_limit_bytes=vmem_limit,
        ),
        cost_estimate=cost,
    )(x, w_t, b2)


# ---------------------------------------------------------------------------
# Forward wrapper
# ---------------------------------------------------------------------------
def densenet_head(x, w_t, b2, n_classes, *, block_batch=None):
    """y = x @ W^T + b, with W pre-transposed/padded by prepare_params.

    x:   (B, in_features)   -- any float dtype; dot runs in w_t.dtype (cast in-kernel)
    w_t: (in_features, C_pad)
    b2:  (1, C_pad) float32
    """
    global _SINGLE_BUFFER_RESIDENT_OK

    B, F = x.shape
    Fw, Cp = w_t.shape
    assert Fw == F, "weight/in_features mismatch"
    out_dtype = x.dtype

    itx = jnp.dtype(x.dtype).itemsize
    itw = jnp.dtype(w_t.dtype).itemsize
    ito = jnp.dtype(out_dtype).itemsize

    # --- VMEM-budgeted batch-tile size --------------------------------------
    vmem_cap = _vmem_capacity_bytes()                  # 64 MiB (v7x) / 128 MiB (v5e/v6e)
    budget = int(vmem_cap * 0.55)                      # footprint target w/ headroom
    per_row = 2 * F * itx + 2 * Cp * ito + Cp * 4      # dbl-buf x + dbl-buf out + f32 acc
    fixed = 2 * F * Cp * itw + 2 * Cp * 4              # resident weight/bias (worst case)
    if budget > fixed:
        tb_cap = max(8, ((budget - fixed) // per_row) // 8 * 8)
    else:
        tb_cap = 8
    if block_batch is not None:
        tb_cap = min(tb_cap, max(8, block_batch))
    TB = _choose_tb(B, tb_cap)

    Bp = _round_up(B, TB)
    if Bp != B:  # fallback only; _choose_tb avoids this whenever possible
        x = jnp.pad(x, ((0, Bp - B), (0, 0)))

    footprint = per_row * TB + fixed
    vmem_limit = int(min(max(footprint * 1.3 + (2 << 20), 32 << 20),
                         vmem_cap * 0.9))

    cost = pl.CostEstimate(
        flops=2 * Bp * F * Cp,
        transcendentals=0,
        bytes_accessed=Bp * F * itx + F * Cp * itw + Cp * 4 + Bp * Cp * ito,
    )

    # --- call (single-buffered resident weight, with cached fallback) -------
    out = None
    if _SINGLE_BUFFER_RESIDENT_OK:
        try:
            out = _pallas_linear(x, w_t, b2, TB=TB, Cp=Cp, out_dtype=out_dtype,
                                 vmem_limit=vmem_limit, cost=cost,
                                 single_buffer_resident=True)
        except Exception:
            _SINGLE_BUFFER_RESIDENT_OK = False
    if out is None:
        out = _pallas_linear(x, w_t, b2, TB=TB, Cp=Cp, out_dtype=out_dtype,
                             vmem_limit=vmem_limit, cost=cost,
                             single_buffer_resident=False)

    return out[:B, :n_classes]


def init_params(key, in_features, n_classes, dtype=jnp.float32):
    """Deterministic init matching nn.Linear shapes (Kaiming-uniform-ish)."""
    kw, kb = jax.random.split(key)
    bound = 1.0 / jnp.sqrt(in_features)
    weight = jax.random.uniform(kw, (n_classes, in_features), dtype,
                                minval=-bound, maxval=bound)
    bias = jax.random.uniform(kb, (n_classes,), dtype,
                              minval=-bound, maxval=bound)
    return weight, bias


if __name__ == "__main__":
    key = jax.random.PRNGKey(0)
    kx, kp, kx2, kp2 = jax.random.split(key, 4)

    # --- small, module-faithful shapes (strict f32 check) -------------------
    batch, in_features, n_classes = 2, 32, 16
    x = jax.random.normal(kx, (batch, in_features), dtype=jnp.float32)
    weight, bias = init_params(kp, in_features, n_classes)
    y_ref = x @ weight.T + bias

    w_t, b2, nc = prepare_params(weight, bias)
    y = jax.block_until_ready(densenet_head(x, w_t, b2, nc))
    assert y.shape == (batch, n_classes)
    assert jnp.allclose(y, y_ref, atol=1e-5, rtol=1e-5)

    # --- bf16 MXU-feed path (in-kernel cast; f32 accumulate + f32 bias) -----
    w_t16, b216, nc16 = prepare_params(weight, bias, mxu_dtype=jnp.bfloat16)
    y16 = jax.block_until_ready(densenet_head(x, w_t16, b216, nc16))
    assert y16.shape == (batch, n_classes)
    assert jnp.allclose(y16, y_ref, atol=2e-2, rtol=2e-2)

    # --- multi-tile path: large batch -> TB=512, grid=2 ("parallel") --------
    B2, F2, C2 = 1024, 64, 10
    x2 = jax.random.normal(kx2, (B2, F2), dtype=jnp.float32)
    w2, bi2 = init_params(kp2, F2, C2)
    y2_ref = x2 @ w2.T + bi2
    w2_t, b2_2, nc2 = prepare_params(w2, bi2)
    y2 = jax.block_until_ready(densenet_head(x2, w2_t, b2_2, nc2))
    assert y2.shape == (B2, C2)
    assert jnp.allclose(y2, y2_ref, atol=1e-3, rtol=1e-3)

    print("KERNEL_OK")
</pallas_src>

<mosaic_0001>
module attributes {stable_mosaic.version = 11 : i64} {
  func.func @_linear_kernel(%arg0: i32, %arg1: memref<2x32xf32, #tpu.memory_space<vmem>>, %arg2: memref<32x128xf32, #tpu.memory_space<vmem>>, %arg3: memref<1x128xf32, #tpu.memory_space<vmem>>, %arg4: memref<2x128xf32, #tpu.memory_space<vmem>>) attributes {dimension_semantics = [#tpu.dimension_semantics<parallel>], iteration_bounds = array<i64: 1>, scalar_prefetch = 0 : i64, scratch_operands = 0 : i64, tpu.core_type = #tpu.core_type<tc>, window_params = [{transform_indices = @transform_0, window_bounds = array<i64: 2, 32>}, {pipeline_mode = #tpu.pipeline_mode<synchronous>, transform_indices = @transform_1, window_bounds = array<i64: 32, 128>}, {pipeline_mode = #tpu.pipeline_mode<synchronous>, transform_indices = @transform_2, window_bounds = array<i64: 1, 128>}, {transform_indices = @transform_3, window_bounds = array<i64: 2, 128>}]} {
    %c0 = arith.constant 0 : index
    %c0_0 = arith.constant 0 : index
    %0 = vector.load %arg1[%c0, %c0_0] : memref<2x32xf32, #tpu.memory_space<vmem>>, vector<2x32xf32>
    %c0_1 = arith.constant 0 : index
    %c0_2 = arith.constant 0 : index
    %1 = vector.load %arg2[%c0_1, %c0_2] : memref<32x128xf32, #tpu.memory_space<vmem>>, vector<32x128xf32>
    %cst = arith.constant dense<0.000000e+00> : vector<2x128xf32>
    %2 = tpu.matmul %0, %1, %cst {dimension_numbers = #tpu.dot_dimension_numbers<[1], [0], [0], [1], [0, 0, 1, 1], [], []>} : vector<2x32xf32>, vector<32x128xf32>, vector<2x128xf32> -> vector<2x128xf32>
    %c0_3 = arith.constant 0 : index
    %c0_4 = arith.constant 0 : index
    %3 = vector.load %arg3[%c0_3, %c0_4] : memref<1x128xf32, #tpu.memory_space<vmem>>, vector<1x128xf32>
    %4 = vector.broadcast %3 : vector<1x128xf32> to vector<2x128xf32>
    %5 = arith.addf %2, %4 : vector<2x128xf32>
    %c0_5 = arith.constant 0 : index
    %c0_6 = arith.constant 0 : index
    %6 = vector.load %arg4[%c0_5, %c0_6] : memref<2x128xf32, #tpu.memory_space<vmem>>, vector<2x128xf32>
    tpu.vector_store %arg4[%c0_5, %c0_6], %5 {strides = array<i32>} : memref<2x128xf32, #tpu.memory_space<vmem>>, vector<2x128xf32>,
    return
  }
  func.func @transform_0(%arg0: i32) -> (i32, i32) {
    %c0_i32 = arith.constant 0 : i32
    %c0_i32_0 = arith.constant 0 : i32
    return %arg0, %c0_i32 : i32, i32
  }
  func.func @transform_1(%arg0: i32) -> (i32, i32) {
    %c0_i32 = arith.constant 0 : i32
    %c0_i32_0 = arith.constant 0 : i32
    %c0_i32_1 = arith.constant 0 : i32
    return %c0_i32, %c0_i32_0 : i32, i32
  }
  func.func @transform_2(%arg0: i32) -> (i32, i32) {
    %c0_i32 = arith.constant 0 : i32
    %c0_i32_0 = arith.constant 0 : i32
    %c0_i32_1 = arith.constant 0 : i32
    return %c0_i32, %c0_i32_0 : i32, i32
  }
  func.func @transform_3(%arg0: i32) -> (i32, i32) {
    %c0_i32 = arith.constant 0 : i32
    %c0_i32_0 = arith.constant 0 : i32
    return %arg0, %c0_i32 : i32, i32
  }
}

module attributes {stable_mosaic.version = 11 : i64} {
  func.func @_linear_kernel(%arg0: i32, %arg1: memref<2x32xf32, #tpu.memory_space<vmem>>, %arg2: memref<32x128xf32, #tpu.memory_space<vmem>>, %arg3: memref<1x128xf32, #tpu.memory_space<vmem>>, %arg4: memref<2x128xf32, #tpu.memory_space<vmem>>) attributes {dimension_semantics = [#tpu.dimension_semantics<parallel>], iteration_bounds = array<i64: 1>, scalar_prefetch = 0 : i64, scratch_operands = 0 : i64, tpu.core_type = #tpu.core_type<tc>, window_params = [{transform_indices = @transform_0, window_bounds = array<i64: 2, 32>}, {pipeline_mode = #tpu.pipeline_mode<synchronous>, transform_indices = @transform_1, window_bounds = array<i64: 32, 128>}, {pipeline_mode = #tpu.pipeline_mode<synchronous>, transform_indices = @transform_2, window_bounds = array<i64: 1, 128>}, {transform_indices = @transform_3, window_bounds = array<i64: 2, 128>}]} {
    %c0 = arith.constant 0 : index
    %c0_0 = arith.constant 0 : index
    %0 = vector.load %arg1[%c0, %c0_0] : memref<2x32xf32, #tpu.memory_space<vmem>>, vector<2x32xf32>
    %c0_1 = arith.constant 0 : index
    %c0_2 = arith.constant 0 : index
    %1 = vector.load %arg2[%c0_1, %c0_2] : memref<32x128xf32, #tpu.memory_space<vmem>>, vector<32x128xf32>
    %cst = arith.constant dense<0.000000e+00> : vector<2x128xf32>
    %2 = tpu.matmul %0, %1, %cst {dimension_numbers = #tpu.dot_dimension_numbers<[1], [0], [0], [1], [0, 0, 1, 1], [], []>} : vector<2x32xf32>, vector<32x128xf32>, vector<2x128xf32> -> vector<2x128xf32>
    %c0_3 = arith.constant 0 : index
    %c0_4 = arith.constant 0 : index
    %3 = vector.load %arg3[%c0_3, %c0_4] : memref<1x128xf32, #tpu.memory_space<vmem>>, vector<1x128xf32>
    %4 = vector.broadcast %3 : vector<1x128xf32> to vector<2x128xf32>
    %5 = arith.addf %2, %4 : vector<2x128xf32>
    %c0_5 = arith.constant 0 : index
    %c0_6 = arith.constant 0 : index
    %6 = vector.load %arg4[%c0_5, %c0_6] : memref<2x128xf32, #tpu.memory_space<vmem>>, vector<2x128xf32>
    tpu.vector_store %arg4[%c0_5, %c0_6], %5 {strides = array<i32>} : memref<2x128xf32, #tpu.memory_space<vmem>>, vector<2x128xf32>,
    return
  }
  func.func @transform_0(%arg0: i32) -> (i32, i32) {
    %c0_i32 = arith.constant 0 : i32
    %c0_i32_0 = arith.constant 0 : i32
    return %arg0, %c0_i32 : i32, i32
  }
  func.func @transform_1(%arg0: i32) -> (i32, i32) {
    %c0_i32 = arith.constant 0 : i32
    %c0_i32_0 = arith.constant 0 : i32
    %c0_i32_1 = arith.constant 0 : i32
    return %c0_i32, %c0_i32_0 : i32, i32
  }
  func.func @transform_2(%arg0: i32) -> (i32, i32) {
    %c0_i32 = arith.constant 0 : i32
    %c0_i32_0 = arith.constant 0 : i32
    %c0_i32_1 = arith.constant 0 : i32
    return %c0_i32, %c0_i32_0 : i32, i32
  }
  func.func @transform_3(%arg0: i32) -> (i32, i32) {
    %c0_i32 = arith.constant 0 : i32
    %c0_i32_0 = arith.constant 0 : i32
    return %arg0, %c0_i32 : i32, i32
  }
}

</mosaic_0001>

<llo_original>
// kernel: tpu_custom_call.1
$region0: #{tpu_custom_call.1}
  #allocation0 [shape = 'u32[]', space=smem, size = 0x4, offset = 0x4, fixed_abs, tag = 'smem constant byte address 0x4 - core index']
  #allocation1 [shape = 'u32[144,128]{1,0:T(1,128)}', space=vmem, size = 0x12000, scoped, tag = 'internal scratch']
  %s0 = inlined_call_operand.hbm [shape: f32[2,32], index: 0, kind: input, shape index: {}]
  %s1 = inlined_call_operand.hbm [shape: f32[32,128], index: 1, kind: input, shape index: {}]
  %s2 = inlined_call_operand.vmem [shape: f32[1,128], index: 2, kind: input, shape index: {}]
  %s3 = inlined_call_operand.hbm [shape: f32[2,128], index: 3, kind: output, shape index: {}]
  %s4 = sld [smem:[#allocation0]]
  $region30: #{tpu_custom_call.1} parent=0
    _
  %s6 = ssub.s32 1, %s4
  %s7 = scalar_select 0, %s6, %s4
  $region1: #{tpu_custom_call.1} parent=0
    #allocation2 [shape = 'u8[1024]{0}', space=vmem, size = 0x400, scoped, tag = 'input window, operand 0, single buffered']
    #allocation3 [shape = 's32[1]{0}', space=sflag, size = 0x4, scoped, tag = 'scoped memory for tpu_custom_call.1']
    #allocation4 [shape = 's32[1]{0}', space=sflag, size = 0x4, scoped, tag = 'scoped memory for tpu_custom_call.1']
    #allocation5 [shape = 'u8[16384]{0}', space=vmem, size = 0x4000, scoped, tag = 'input window, operand 1, single buffered']
    #allocation6 [shape = 's32[1]{0}', space=sflag, size = 0x4, scoped, tag = 'scoped memory for tpu_custom_call.1']
    #allocation7 [shape = 'u8[1024]{0}', space=vmem, size = 0x400, scoped, tag = 'output window, operand 0, single buffered']
    %8 = vsyncpa [#allocation3], 0
    %9 = vsyncpa [#allocation6], 0
    %10 = vsyncpa [#allocation4], 0
    // Predicated region
    $region2: #{tpu_custom_call.1} parent=1 // pred_check
      _
    $region3: #{tpu_custom_call.1} parent=1 // pred_check_branch
      %12 = sbr.rel (0) target = $region5
    $region4: #{tpu_custom_call.1} parent=1 // pred_region
      %s14 = ssub.s32 32, 32
      %15 = vsyncadd [#allocation3], %s14
      %s17 = sshll.u32 [#allocation2], 4
      %s18 = int_to_ptr.vmem [resolvable:$true] %s17
      %20 = dma.hbm_to_vmem [thread:$0]  %s0, 32, %s18, [#allocation3]
    $region5: #{tpu_custom_call.1} parent=1 // pred_fallthru
      _
    // Predicated region
    $region6: #{tpu_custom_call.1} parent=1 // pred_check
      _
    $region7: #{tpu_custom_call.1} parent=1 // pred_check_branch
      %22 = sbr.rel (0) target = $region9
    $region8: #{tpu_custom_call.1} parent=1 // pred_region
      %s24 = ssub.s32 512, 512
      %25 = vsyncadd [#allocation6], %s24
      %s26 = sshll.u32 [#allocation5], 4
      %s27 = int_to_ptr.vmem [resolvable:$true] %s26
      %32 = dma.hbm_to_vmem [thread:$0]  %s1, 512, %s27, [#allocation6], 128, 128, 8
    $region9: #{tpu_custom_call.1} parent=1 // pred_fallthru
      _
    // Predicated region
    $region10: #{tpu_custom_call.1} parent=1 // pred_check
      _
    $region11: #{tpu_custom_call.1} parent=1 // pred_check_branch
      %34 = sbr.rel (0) target = $region13
    $region12: #{tpu_custom_call.1} parent=1 // pred_region
      _
    $region13: #{tpu_custom_call.1} parent=1 // pred_fallthru
      _
    // Predicated region
    $region14: #{tpu_custom_call.1} parent=1 // pred_check
      _
    $region15: #{tpu_custom_call.1} parent=1 // pred_check_branch
      %36 = sbr.rel (0) target = $region17
    $region16: #{tpu_custom_call.1} parent=1 // pred_region
      %37 = dma.done [#allocation3], 32
    $region17: #{tpu_custom_call.1} parent=1 // pred_fallthru
      _
    // Predicated region
    $region18: #{tpu_custom_call.1} parent=1 // pred_check
      _
    $region19: #{tpu_custom_call.1} parent=1 // pred_check_branch
      %39 = sbr.rel (0) target = $region21
    $region20: #{tpu_custom_call.1} parent=1 // pred_region
      %40 = dma.done [#allocation6], 512
    $region21: #{tpu_custom_call.1} parent=1 // pred_fallthru
      _
    %v41 = vld [vmem:[#allocation2] sm:$0x3]
    %v42 = vld [vmem:[#allocation5] sm:$0xff]
    %v43 = vld [vmem:[#allocation5 + $0x8] sm:$0xff]
    %v44 = vld [vmem:[#allocation5 + $0x10] sm:$0xff]
    %v45 = vld [vmem:[#allocation5 + $0x18] sm:$0xff]
    %v46 = vld [vmem:[%s2] sm:$0x1]
    %v48 = vlaneseq
    %v49 = vshrl.u32 %v48, 7
    %v50 = vsub.s32 0, %v49
    %v51 = vrot.slane %v46, %v50
    %vm53 = vcmask 261120
    %v55 = vsel %vm53, %v41, 0
    %57 = vmatprep.subr.mxu0 0.0
    %58 = vmatpush1.msra.mxu0 0.0
    %59 = vmatprep.subr.mxu0 0.0
    %60 = vmatpush1.msra.mxu0 0.0
    %61 = vmatprep.subr.mxu0 0.0
    %62 = vmatpush1.msra.mxu0 0.0
    %63 = vmatprep.subr.mxu0 0.0
    %64 = vmatpush1.msra.mxu0 0.0
    %65 = vmatprep.subr.mxu0 0.0
    %66 = vmatpush1.msra.mxu0 0.0
    %67 = vmatprep.subr.mxu0 0.0
    %68 = vmatpush1.msra.mxu0 0.0
    %69 = vmatprep.subr.mxu0 0.0
    %70 = vmatpush1.msra.mxu0 0.0
    %71 = vmatprep.subr.mxu0 0.0
    %72 = vmatpush1.msra.mxu0 0.0
    %73 = vmatprep.subr.mxu0 0.0
    %74 = vmatpush1.msra.mxu0 0.0
    %75 = vmatprep.subr.mxu0 0.0
    %76 = vmatpush1.msra.mxu0 0.0
    %77 = vmatprep.subr.mxu0 0.0
    %78 = vmatpush1.msra.mxu0 0.0
    %79 = vmatprep.subr.mxu0 0.0
    %80 = vmatpush1.msra.mxu0 0.0
    %81 = vmatprep.subr.mxu0 0.0
    %82 = vmatpush1.msra.mxu0 %v45
    %83 = vmatprep.subr.mxu0 0.0
    %84 = vmatpush1.msra.mxu0 %v44
    %85 = vmatprep.subr.mxu0 0.0
    %86 = vmatpush1.msra.mxu0 %v43
    %87 = vmatprep.subr.mxu0 0.0
    %88 = vmatpush1.msra.mxu0 %v42
    %89 = vmatprep.subr.mxu0 0.0
    %90 = vmatpush2.msra.mxu0 0.0
    %91 = vmatprep.subr.mxu0 0.0
    %92 = vmatpush2.msra.mxu0 0.0
    %93 = vmatprep.subr.mxu0 0.0
    %94 = vmatpush2.msra.mxu0 0.0
    %95 = vmatprep.subr.mxu0 0.0
    %96 = vmatpush2.msra.mxu0 0.0
    %97 = vmatprep.subr.mxu0 0.0
    %98 = vmatpush2.msra.mxu0 0.0
    %99 = vmatprep.subr.mxu0 0.0
    %100 = vmatpush2.msra.mxu0 0.0
    %101 = vmatprep.subr.mxu0 0.0
    %102 = vmatpush2.msra.mxu0 0.0
    %103 = vmatprep.subr.mxu0 0.0
    %104 = vmatpush2.msra.mxu0 0.0
    %105 = vmatprep.subr.mxu0 0.0
    %106 = vmatpush2.msra.mxu0 0.0
    %107 = vmatprep.subr.mxu0 0.0
    %108 = vmatpush2.msra.mxu0 0.0
    %109 = vmatprep.subr.mxu0 0.0
    %110 = vmatpush2.msra.mxu0 0.0
    %111 = vmatprep.subr.mxu0 0.0
    %112 = vmatpush2.msra.mxu0 0.0
    %113 = vmatprep.subr.mxu0 0.0
    %114 = vmatpush2.msra.mxu0 0.0
    %115 = vmatprep.subr.mxu0 0.0
    %116 = vmatpush2.msra.mxu0 0.0
    %117 = vmatprep.subr.mxu0 0.0
    %118 = vmatpush2.msra.mxu0 0.0
    %119 = vmatprep.subr.mxu0 0.0
    %120 = vmatpush2.msra.mxu0 0.0
    %121 = vmatprep.mubr.f32.mxu0 0.0
    %122 = vmatmul.mubr.f32.gmra.mxu0 %v55
    %v123 = vpop.f32.mrf.mxu0
    %v124 = vadd.f32 %v51, %v123
    %v125 = vpop.f32.mrf.mxu0
    %126 = vdwg.mxu0
    %127 = vst [vmem:[#allocation7] sm:$0x3] %v124
    // Predicated region
    $region22: #{tpu_custom_call.1} parent=1 // pred_check
      _
    $region23: #{tpu_custom_call.1} parent=1 // pred_check_branch
      %129 = sbr.rel (0) target = $region25
    $region24: #{tpu_custom_call.1} parent=1 // pred_region
      %s131 = ssub.s32 32, 32
      %132 = vsyncadd [#allocation4], %s131
      %s134 = sshll.u32 [#allocation7], 4
      %s135 = int_to_ptr.vmem [resolvable:$true] %s134
      %137 = dma.vmem_to_hbm [thread:$0]  %s135, 32, %s3, [#allocation4]
    $region25: #{tpu_custom_call.1} parent=1 // pred_fallthru
      _
    // Predicated region
    $region26: #{tpu_custom_call.1} parent=1 // pred_check
      _
    $region27: #{tpu_custom_call.1} parent=1 // pred_check_branch
      %139 = sbr.rel (0) target = $region29
    $region28: #{tpu_custom_call.1} parent=1 // pred_region
      %140 = dma.done [#allocation4], 32
    $region29: #{tpu_custom_call.1} parent=1 // pred_fallthru
      _
    %141 = vsyncpa [#allocation3], 1
    %142 = vsyncpa [#allocation6], 1
    %143 = vsyncpa [#allocation4], 1

// kernel: tpu_custom_call.1
$region0: #{tpu_custom_call.1}
  #allocation0 [shape = 'u32[]', space=smem, size = 0x4, offset = 0x4, fixed_abs, tag = 'smem constant byte address 0x4 - core index']
  #allocation1 [shape = 'u32[144,128]{1,0:T(1,128)}', space=vmem, size = 0x12000, scoped, tag = 'internal scratch']
  %s0 = inlined_call_operand.hbm [shape: f32[2,32], index: 0, kind: input, shape index: {}]
  %s1 = inlined_call_operand.hbm [shape: f32[32,128], index: 1, kind: input, shape index: {}]
  %s2 = inlined_call_operand.vmem [shape: f32[1,128], index: 2, kind: input, shape index: {}]
  %s3 = inlined_call_operand.hbm [shape: f32[2,128], index: 3, kind: output, shape index: {}]
  %s4 = sld [smem:[#allocation0]]
  $region30: #{tpu_custom_call.1} parent=0
    _
  %s6 = ssub.s32 1, %s4
  %s7 = scalar_select 0, %s6, %s4
  $region1: #{tpu_custom_call.1} parent=0
    #allocation2 [shape = 'u8[1024]{0}', space=vmem, size = 0x400, scoped, tag = 'input window, operand 0, single buffered']
    #allocation3 [shape = 's32[1]{0}', space=sflag, size = 0x4, scoped, tag = 'scoped memory for tpu_custom_call.1']
    #allocation4 [shape = 's32[1]{0}', space=sflag, size = 0x4, scoped, tag = 'scoped memory for tpu_custom_call.1']
    #allocation5 [shape = 'u8[16384]{0}', space=vmem, size = 0x4000, scoped, tag = 'input window, operand 1, single buffered']
    #allocation6 [shape = 's32[1]{0}', space=sflag, size = 0x4, scoped, tag = 'scoped memory for tpu_custom_call.1']
    #allocation7 [shape = 'u8[1024]{0}', space=vmem, size = 0x400, scoped, tag = 'output window, operand 0, single buffered']
    %8 = vsyncpa [#allocation3], 0
    %9 = vsyncpa [#allocation6], 0
    %10 = vsyncpa [#allocation4], 0
    // Predicated region
    $region2: #{tpu_custom_call.1} parent=1 // pred_check
      _
    $region3: #{tpu_custom_call.1} parent=1 // pred_check_branch
      %12 = sbr.rel (0) target = $region5
    $region4: #{tpu_custom_call.1} parent=1 // pred_region
      %s14 = ssub.s32 32, 32
      %15 = vsyncadd [#allocation3], %s14
      %s17 = sshll.u32 [#allocation2], 4
      %s18 = int_to_ptr.vmem [resolvable:$true] %s17
      %20 = dma.hbm_to_vmem [thread:$0]  %s0, 32, %s18, [#allocation3]
    $region5: #{tpu_custom_call.1} parent=1 // pred_fallthru
      _
    // Predicated region
    $region6: #{tpu_custom_call.1} parent=1 // pred_check
      _
    $region7: #{tpu_custom_call.1} parent=1 // pred_check_branch
      %22 = sbr.rel (0) target = $region9
    $region8: #{tpu_custom_call.1} parent=1 // pred_region
      %s24 = ssub.s32 512, 512
      %25 = vsyncadd [#allocation6], %s24
      %s26 = sshll.u32 [#allocation5], 4
      %s27 = int_to_ptr.vmem [resolvable:$true] %s26
      %32 = dma.hbm_to_vmem [thread:$0]  %s1, 512, %s27, [#allocation6], 128, 128, 8
    $region9: #{tpu_custom_call.1} parent=1 // pred_fallthru
      _
    // Predicated region
    $region10: #{tpu_custom_call.1} parent=1 // pred_check
      _
    $region11: #{tpu_custom_call.1} parent=1 // pred_check_branch
      %34 = sbr.rel (0) target = $region13
    $region12: #{tpu_custom_call.1} parent=1 // pred_region
      _
    $region13: #{tpu_custom_call.1} parent=1 // pred_fallthru
      _
    // Predicated region
    $region14: #{tpu_custom_call.1} parent=1 // pred_check
      _
    $region15: #{tpu_custom_call.1} parent=1 // pred_check_branch
      %36 = sbr.rel (0) target = $region17
    $region16: #{tpu_custom_call.1} parent=1 // pred_region
      %37 = dma.done [#allocation3], 32
    $region17: #{tpu_custom_call.1} parent=1 // pred_fallthru
      _
    // Predicated region
    $region18: #{tpu_custom_call.1} parent=1 // pred_check
      _
    $region19: #{tpu_custom_call.1} parent=1 // pred_check_branch
      %39 = sbr.rel (0) target = $region21
    $region20: #{tpu_custom_call.1} parent=1 // pred_region
      %40 = dma.done [#allocation6], 512
    $region21: #{tpu_custom_call.1} parent=1 // pred_fallthru
      _
    %v41 = vld [vmem:[#allocation2] sm:$0x3]
    %v42 = vld [vmem:[#allocation5] sm:$0xff]
    %v43 = vld [vmem:[#allocation5 + $0x8] sm:$0xff]
    %v44 = vld [vmem:[#allocation5 + $0x10] sm:$0xff]
    %v45 = vld [vmem:[#allocation5 + $0x18] sm:$0xff]
    %v46 = vld [vmem:[%s2] sm:$0x1]
    %v48 = vlaneseq
    %v49 = vshrl.u32 %v48, 7
    %v50 = vsub.s32 0, %v49
    %v51 = vrot.slane %v46, %v50
    %vm53 = vcmask 261120
    %v55 = vsel %vm53, %v41, 0
    %57 = vmatprep.subr.mxu0 0.0
    %58 = vmatpush1.msra.mxu0 0.0
    %59 = vmatprep.subr.mxu0 0.0
    %60 = vmatpush1.msra.mxu0 0.0
    %61 = vmatprep.subr.mxu0 0.0
    %62 = vmatpush1.msra.mxu0 0.0
    %63 = vmatprep.subr.mxu0 0.0
    %64 = vmatpush1.msra.mxu0 0.0
    %65 = vmatprep.subr.mxu0 0.0
    %66 = vmatpush1.msra.mxu0 0.0
    %67 = vmatprep.subr.mxu0 0.0
    %68 = vmatpush1.msra.mxu0 0.0
    %69 = vmatprep.subr.mxu0 0.0
    %70 = vmatpush1.msra.mxu0 0.0
    %71 = vmatprep.subr.mxu0 0.0
    %72 = vmatpush1.msra.mxu0 0.0
    %73 = vmatprep.subr.mxu0 0.0
    %74 = vmatpush1.msra.mxu0 0.0
    %75 = vmatprep.subr.mxu0 0.0
    %76 = vmatpush1.msra.mxu0 0.0
    %77 = vmatprep.subr.mxu0 0.0
    %78 = vmatpush1.msra.mxu0 0.0
    %79 = vmatprep.subr.mxu0 0.0
    %80 = vmatpush1.msra.mxu0 0.0
    %81 = vmatprep.subr.mxu0 0.0
    %82 = vmatpush1.msra.mxu0 %v45
    %83 = vmatprep.subr.mxu0 0.0
    %84 = vmatpush1.msra.mxu0 %v44
    %85 = vmatprep.subr.mxu0 0.0
    %86 = vmatpush1.msra.mxu0 %v43
    %87 = vmatprep.subr.mxu0 0.0
    %88 = vmatpush1.msra.mxu0 %v42
    %89 = vmatprep.subr.mxu0 0.0
    %90 = vmatpush2.msra.mxu0 0.0
    %91 = vmatprep.subr.mxu0 0.0
    %92 = vmatpush2.msra.mxu0 0.0
    %93 = vmatprep.subr.mxu0 0.0
    %94 = vmatpush2.msra.mxu0 0.0
    %95 = vmatprep.subr.mxu0 0.0
    %96 = vmatpush2.msra.mxu0 0.0
    %97 = vmatprep.subr.mxu0 0.0
    %98 = vmatpush2.msra.mxu0 0.0
    %99 = vmatprep.subr.mxu0 0.0
    %100 = vmatpush2.msra.mxu0 0.0
    %101 = vmatprep.subr.mxu0 0.0
    %102 = vmatpush2.msra.mxu0 0.0
    %103 = vmatprep.subr.mxu0 0.0
    %104 = vmatpush2.msra.mxu0 0.0
    %105 = vmatprep.subr.mxu0 0.0
    %106 = vmatpush2.msra.mxu0 0.0
    %107 = vmatprep.subr.mxu0 0.0
    %108 = vmatpush2.msra.mxu0 0.0
    %109 = vmatprep.subr.mxu0 0.0
    %110 = vmatpush2.msra.mxu0 0.0
    %111 = vmatprep.subr.mxu0 0.0
    %112 = vmatpush2.msra.mxu0 0.0
    %113 = vmatprep.subr.mxu0 0.0
    %114 = vmatpush2.msra.mxu0 0.0
    %115 = vmatprep.subr.mxu0 0.0
    %116 = vmatpush2.msra.mxu0 0.0
    %117 = vmatprep.subr.mxu0 0.0
    %118 = vmatpush2.msra.mxu0 0.0
    %119 = vmatprep.subr.mxu0 0.0
    %120 = vmatpush2.msra.mxu0 0.0
    %121 = vmatprep.mubr.f32.mxu0 0.0
    %122 = vmatmul.mubr.f32.gmra.mxu0 %v55
    %v123 = vpop.f32.mrf.mxu0
    %v124 = vadd.f32 %v51, %v123
    %v125 = vpop.f32.mrf.mxu0
    %126 = vdwg.mxu0
    %127 = vst [vmem:[#allocation7] sm:$0x3] %v124
    // Predicated region
    $region22: #{tpu_custom_call.1} parent=1 // pred_check
      _
    $region23: #{tpu_custom_call.1} parent=1 // pred_check_branch
      %129 = sbr.rel (0) target = $region25
    $region24: #{tpu_custom_call.1} parent=1 // pred_region
      %s131 = ssub.s32 32, 32
      %132 = vsyncadd [#allocation4], %s131
      %s134 = sshll.u32 [#allocation7], 4
      %s135 = int_to_ptr.vmem [resolvable:$true] %s134
      %137 = dma.vmem_to_hbm [thread:$0]  %s135, 32, %s3, [#allocation4]
    $region25: #{tpu_custom_call.1} parent=1 // pred_fallthru
      _
    // Predicated region
    $region26: #{tpu_custom_call.1} parent=1 // pred_check
      _
    $region27: #{tpu_custom_call.1} parent=1 // pred_check_branch
      %139 = sbr.rel (0) target = $region29
    $region28: #{tpu_custom_call.1} parent=1 // pred_region
      %140 = dma.done [#allocation4], 32
    $region29: #{tpu_custom_call.1} parent=1 // pred_fallthru
      _
    %141 = vsyncpa [#allocation3], 1
    %142 = vsyncpa [#allocation6], 1
    %143 = vsyncpa [#allocation4], 1

</llo_original>
